<compile_context>
chip_gen: v6e
topology: v6e:2x2x1
jax: 0.10.0
libtpu: 0.0.40
codegen_flags: <defaults>
</compile_context>

<pallas_src>
import jax
import jax.numpy as jnp
from jax.experimental import pallas as pl
from jax.experimental.pallas import tpu as pltpu

LANE = 128
SUBLANE = 8


def _round_up(n, m):
    return ((n + m - 1) // m) * m


def _mlp_kernel(x_ref, w1_ref, wh_ref, b_ref, o_ref):
    """relu(l5(relu(l4(relu(l3(relu(l2(relu(l1(x)))))))))) on one batch tile."""
    # f32 HBM read, bf16 cast in VMEM (no extra HBM pad/cast pass in the wrapper).
    h = x_ref[...].astype(jnp.bfloat16)

    # Layer 1: (bm, d_in) @ (d_in, H); bias add + ReLU in f32 on the VPU.
    y = jnp.dot(h, w1_ref[...], preferred_element_type=jnp.float32)
    h = jnp.maximum(y + b_ref[0:1, :], 0.0).astype(jnp.bfloat16)

    # Layers 2..5: packed resident (4, H, H) weights, static unrolled loop.
    for j in range(wh_ref.shape[0]):
        y = jnp.dot(h, wh_ref[j], preferred_element_type=jnp.float32)
        h = jnp.maximum(y + b_ref[j + 1:j + 2, :], 0.0).astype(jnp.bfloat16)

    o_ref[...] = h  # bf16 output (halved writeback)


def prepare_params(params, *, compute_dtype=jnp.bfloat16):
    """One-time preprocessing of nn.Linear params (call once, reuse every forward).

    params: list of (W (in, out), b (out,)) f32, weights already transposed to (in, out).
    Returns (w1_p (d_in, H) bf16, wh_p (n_hidden, H, H) bf16, b_p (n_layers, H) f32),
    where H = 128-rounded max feature width.  Padded columns are zero, so
    ReLU(0 + 0) = 0 and they never affect the real outputs.
    """
    d_in = params[0][0].shape[0]
    H = LANE
    for (w, _) in params:
        H = max(H, _round_up(w.shape[1], LANE))
    for (w, _) in params[1:]:
        H = max(H, _round_up(w.shape[0], LANE))

    w1, _ = params[0]
    w1_p = jnp.zeros((d_in, H), compute_dtype).at[:, :w1.shape[1]].set(
        w1.astype(compute_dtype))

    wh_p = jnp.stack([
        jnp.zeros((H, H), compute_dtype).at[:w.shape[0], :w.shape[1]].set(
            w.astype(compute_dtype))
        for (w, _) in params[1:]
    ], axis=0)

    b_p = jnp.stack([
        jnp.zeros((H,), jnp.float32).at[:b.shape[0]].set(
            b.reshape(-1).astype(jnp.float32))
        for (_, b) in params
    ], axis=0)

    return w1_p, wh_p, b_p


def _choose_block_batch(B, d_in):
    """Single grid step when the batch fits; cap so the double-buffered f32
    input block stays <= ~8 MiB (safe on v5e's 16 MiB scoped VMEM default)."""
    b8 = _round_up(B, SUBLANE)
    vmem_rows = max(SUBLANE, (4 * 1024 * 1024 // (4 * d_in)) // SUBLANE * SUBLANE)
    cap = min(2048, vmem_rows)
    # Note (v7x): for very large batches grid >= 2 falls out naturally; for
    # small/medium batches one block beats a forced megacore split.
    return min(b8, cap)


def mnist_model_forward(x, prepared, *, block_batch=None):
    """x: (B, d_in) float32.  prepared: output of prepare_params()."""
    w1_p, wh_p, b_p = prepared
    B, d_in = x.shape
    assert w1_p.shape[0] == d_in, "prepared params don't match input width"
    H = w1_p.shape[1]

    if block_batch is None:
        block_batch = _choose_block_batch(B, d_in)
    grid = pl.cdiv(B, block_batch)

    out = pl.pallas_call(
        _mlp_kernel,
        out_shape=jax.ShapeDtypeStruct((B, H), jnp.bfloat16),
        grid_spec=pltpu.PrefetchScalarGridSpec(
            num_scalar_prefetch=0,
            grid=(grid,),
            in_specs=[
                # x: full-extent last dim (exempt from the 128 rule); ragged
                # last batch block handled by Pallas (masked store, sliced off).
                pl.BlockSpec((block_batch, d_in), lambda i: (i, 0)),
                # Tiny params: full-array blocks, constant index_map -> VMEM-resident.
                pl.BlockSpec(w1_p.shape, lambda i: (0, 0)),
                pl.BlockSpec(wh_p.shape, lambda i: (0, 0, 0)),
                pl.BlockSpec(b_p.shape, lambda i: (0, 0)),
            ],
            out_specs=pl.BlockSpec((block_batch, H), lambda i: (i, 0)),
        ),
        compiler_params=pltpu.CompilerParams(
            dimension_semantics=("parallel",),
        ),
    )(x, w1_p, wh_p, b_p)
    return out  # (B, H) bf16; caller slices [:, :d_out] and upcasts if needed


def init_params(key, num_in, num_out):
    """Deterministic init matching nn.Linear's U(-1/sqrt(fan_in), 1/sqrt(fan_in)).
    Returns list of (W transposed to (in, out), bias (out,)) in float32."""
    dims = [(num_in, 10), (10, 10), (10, 20), (20, 20), (20, num_out)]
    params = []
    for (fan_in, fan_out) in dims:
        key, kw, kb = jax.random.split(key, 3)
        bound = 1.0 / (fan_in ** 0.5)
        w = jax.random.uniform(kw, (fan_in, fan_out), jnp.float32, -bound, bound)
        b = jax.random.uniform(kb, (fan_out,), jnp.float32, -bound, bound)
        params.append((w, b))
    return params


def reference_forward(x, params):
    """Pure-JAX f32 reference matching MNIST_Model.forward (ReLU after every layer)."""
    h = x
    for (w, b) in params:
        h = jnp.maximum(h @ w + b, 0.0)
    return h


if __name__ == "__main__":
    key = jax.random.PRNGKey(0)
    num_of_input_channels = 32    # small stand-in for 784 (module takes it as a ctor arg)
    num_of_output_channels = 10
    batch = 20                    # deliberately NOT a multiple of 8: exercises ragged handling

    kx, kp = jax.random.split(key)
    x = jax.random.normal(kx, (batch, num_of_input_channels), jnp.float32)
    params = init_params(kp, num_of_input_channels, num_of_output_channels)

    # One-time parameter preprocessing (pad + pack + bf16 cast), reused per forward.
    prepared = prepare_params(params)
    prepared = jax.tree_util.tree_map(jax.block_until_ready, prepared)

    # TODO(synk): nn.Softmax is instantiated in the module but never used in forward(); omitted.
    out_padded = mnist_model_forward(x, prepared)
    out_padded = jax.block_until_ready(out_padded)
    out = out_padded[:batch, :num_of_output_channels].astype(jnp.float32)

    ref = reference_forward(x, params)
    assert out.shape == (batch, num_of_output_channels)
    # bf16 MXU inputs + bf16 output with f32 accumulation: ~1% deviation vs f32 reference.
    assert jnp.allclose(out, ref, atol=3e-2, rtol=3e-2), "mismatch vs JAX reference"

    print("KERNEL_OK")
</pallas_src>

<mosaic_0001>
module attributes {stable_mosaic.version = 11 : i64} {
  func.func @_mlp_kernel(%arg0: i32, %arg1: memref<24x32xf32, #tpu.memory_space<vmem>>, %arg2: memref<32x128xbf16, #tpu.memory_space<vmem>>, %arg3: memref<4x128x128xbf16, #tpu.memory_space<vmem>>, %arg4: memref<5x128xf32, #tpu.memory_space<vmem>>, %arg5: memref<24x128xbf16, #tpu.memory_space<vmem>>) attributes {dimension_semantics = [#tpu.dimension_semantics<parallel>], iteration_bounds = array<i64: 1>, scalar_prefetch = 0 : i64, scratch_operands = 0 : i64, tpu.core_type = #tpu.core_type<tc>, window_params = [{transform_indices = @transform_0, window_bounds = array<i64: 24, 32>}, {pipeline_mode = #tpu.pipeline_mode<synchronous>, transform_indices = @transform_1, window_bounds = array<i64: 32, 128>}, {pipeline_mode = #tpu.pipeline_mode<synchronous>, transform_indices = @transform_2, window_bounds = array<i64: 4, 128, 128>}, {pipeline_mode = #tpu.pipeline_mode<synchronous>, transform_indices = @transform_3, window_bounds = array<i64: 5, 128>}, {transform_indices = @transform_4, window_bounds = array<i64: 24, 128>}]} {
    %c0 = arith.constant 0 : index
    %c0_0 = arith.constant 0 : index
    %0 = vector.load %arg1[%c0, %c0_0] : memref<24x32xf32, #tpu.memory_space<vmem>>, vector<24x32xf32>
    %1 = arith.truncf %0 : vector<24x32xf32> to vector<24x32xbf16>
    %c0_1 = arith.constant 0 : index
    %c0_2 = arith.constant 0 : index
    %2 = vector.load %arg2[%c0_1, %c0_2] : memref<32x128xbf16, #tpu.memory_space<vmem>>, vector<32x128xbf16>
    %cst = arith.constant dense<0.000000e+00> : vector<24x128xf32>
    %3 = tpu.matmul %1, %2, %cst {dimension_numbers = #tpu.dot_dimension_numbers<[1], [0], [0], [1], [0, 0, 1, 1], [], []>} : vector<24x32xbf16>, vector<32x128xbf16>, vector<24x128xf32> -> vector<24x128xf32>
    %c0_3 = arith.constant 0 : index
    %c0_4 = arith.constant 0 : index
    %4 = vector.load %arg4[%c0_3, %c0_4] : memref<5x128xf32, #tpu.memory_space<vmem>>, vector<1x128xf32>
    %5 = vector.broadcast %4 : vector<1x128xf32> to vector<24x128xf32>
    %6 = arith.addf %3, %5 : vector<24x128xf32>
    %cst_5 = arith.constant 0.000000e+00 : f32
    %7 = vector.broadcast %cst_5 : f32 to vector<24x128xf32>
    %8 = arith.maximumf %6, %7 : vector<24x128xf32>
    %9 = arith.truncf %8 : vector<24x128xf32> to vector<24x128xbf16>
    %c0_6 = arith.constant 0 : index
    %c0_7 = arith.constant 0 : index
    %c0_8 = arith.constant 0 : index
    %10 = vector.load %arg3[%c0_6, %c0_7, %c0_8] : memref<4x128x128xbf16, #tpu.memory_space<vmem>>, vector<1x128x128xbf16>
    %11 = vector.shape_cast %10 : vector<1x128x128xbf16> to vector<128x128xbf16>
    %cst_9 = arith.constant dense<0.000000e+00> : vector<24x128xf32>
    %12 = tpu.matmul %9, %11, %cst_9 {dimension_numbers = #tpu.dot_dimension_numbers<[1], [0], [0], [1], [0, 0, 1, 1], [], []>} : vector<24x128xbf16>, vector<128x128xbf16>, vector<24x128xf32> -> vector<24x128xf32>
    %c1 = arith.constant 1 : index
    %c0_10 = arith.constant 0 : index
    %13 = vector.load %arg4[%c1, %c0_10] : memref<5x128xf32, #tpu.memory_space<vmem>>, vector<1x128xf32>
    %14 = vector.broadcast %13 : vector<1x128xf32> to vector<24x128xf32>
    %15 = arith.addf %12, %14 : vector<24x128xf32>
    %cst_11 = arith.constant 0.000000e+00 : f32
    %16 = vector.broadcast %cst_11 : f32 to vector<24x128xf32>
    %17 = arith.maximumf %15, %16 : vector<24x128xf32>
    %18 = arith.truncf %17 : vector<24x128xf32> to vector<24x128xbf16>
    %c1_12 = arith.constant 1 : index
    %c0_13 = arith.constant 0 : index
    %c0_14 = arith.constant 0 : index
    %19 = vector.load %arg3[%c1_12, %c0_13, %c0_14] : memref<4x128x128xbf16, #tpu.memory_space<vmem>>, vector<1x128x128xbf16>
    %20 = vector.shape_cast %19 : vector<1x128x128xbf16> to vector<128x128xbf16>
    %cst_15 = arith.constant dense<0.000000e+00> : vector<24x128xf32>
    %21 = tpu.matmul %18, %20, %cst_15 {dimension_numbers = #tpu.dot_dimension_numbers<[1], [0], [0], [1], [0, 0, 1, 1], [], []>} : vector<24x128xbf16>, vector<128x128xbf16>, vector<24x128xf32> -> vector<24x128xf32>
    %c2 = arith.constant 2 : index
    %c0_16 = arith.constant 0 : index
    %22 = vector.load %arg4[%c2, %c0_16] : memref<5x128xf32, #tpu.memory_space<vmem>>, vector<1x128xf32>
    %23 = vector.broadcast %22 : vector<1x128xf32> to vector<24x128xf32>
    %24 = arith.addf %21, %23 : vector<24x128xf32>
    %cst_17 = arith.constant 0.000000e+00 : f32
    %25 = vector.broadcast %cst_17 : f32 to vector<24x128xf32>
    %26 = arith.maximumf %24, %25 : vector<24x128xf32>
    %27 = arith.truncf %26 : vector<24x128xf32> to vector<24x128xbf16>
    %c2_18 = arith.constant 2 : index
    %c0_19 = arith.constant 0 : index
    %c0_20 = arith.constant 0 : index
    %28 = vector.load %arg3[%c2_18, %c0_19, %c0_20] : memref<4x128x128xbf16, #tpu.memory_space<vmem>>, vector<1x128x128xbf16>
    %29 = vector.shape_cast %28 : vector<1x128x128xbf16> to vector<128x128xbf16>
    %cst_21 = arith.constant dense<0.000000e+00> : vector<24x128xf32>
    %30 = tpu.matmul %27, %29, %cst_21 {dimension_numbers = #tpu.dot_dimension_numbers<[1], [0], [0], [1], [0, 0, 1, 1], [], []>} : vector<24x128xbf16>, vector<128x128xbf16>, vector<24x128xf32> -> vector<24x128xf32>
    %c3 = arith.constant 3 : index
    %c0_22 = arith.constant 0 : index
    %31 = vector.load %arg4[%c3, %c0_22] : memref<5x128xf32, #tpu.memory_space<vmem>>, vector<1x128xf32>
    %32 = vector.broadcast %31 : vector<1x128xf32> to vector<24x128xf32>
    %33 = arith.addf %30, %32 : vector<24x128xf32>
    %cst_23 = arith.constant 0.000000e+00 : f32
    %34 = vector.broadcast %cst_23 : f32 to vector<24x128xf32>
    %35 = arith.maximumf %33, %34 : vector<24x128xf32>
    %36 = arith.truncf %35 : vector<24x128xf32> to vector<24x128xbf16>
    %c3_24 = arith.constant 3 : index
    %c0_25 = arith.constant 0 : index
    %c0_26 = arith.constant 0 : index
    %37 = vector.load %arg3[%c3_24, %c0_25, %c0_26] : memref<4x128x128xbf16, #tpu.memory_space<vmem>>, vector<1x128x128xbf16>
    %38 = vector.shape_cast %37 : vector<1x128x128xbf16> to vector<128x128xbf16>
    %cst_27 = arith.constant dense<0.000000e+00> : vector<24x128xf32>
    %39 = tpu.matmul %36, %38, %cst_27 {dimension_numbers = #tpu.dot_dimension_numbers<[1], [0], [0], [1], [0, 0, 1, 1], [], []>} : vector<24x128xbf16>, vector<128x128xbf16>, vector<24x128xf32> -> vector<24x128xf32>
    %c4 = arith.constant 4 : index
    %c0_28 = arith.constant 0 : index
    %40 = vector.load %arg4[%c4, %c0_28] : memref<5x128xf32, #tpu.memory_space<vmem>>, vector<1x128xf32>
    %41 = vector.broadcast %40 : vector<1x128xf32> to vector<24x128xf32>
    %42 = arith.addf %39, %41 : vector<24x128xf32>
    %cst_29 = arith.constant 0.000000e+00 : f32
    %43 = vector.broadcast %cst_29 : f32 to vector<24x128xf32>
    %44 = arith.maximumf %42, %43 : vector<24x128xf32>
    %45 = arith.truncf %44 : vector<24x128xf32> to vector<24x128xbf16>
    %c0_30 = arith.constant 0 : index
    %c0_31 = arith.constant 0 : index
    %46 = vector.load %arg5[%c0_30, %c0_31] : memref<24x128xbf16, #tpu.memory_space<vmem>>, vector<24x128xbf16>
    tpu.vector_store %arg5[%c0_30, %c0_31], %45 {strides = array<i32>} : memref<24x128xbf16, #tpu.memory_space<vmem>>, vector<24x128xbf16>,
    return
  }
  func.func @transform_0(%arg0: i32) -> (i32, i32) {
    %c0_i32 = arith.constant 0 : i32
    %c0_i32_0 = arith.constant 0 : i32
    return %arg0, %c0_i32 : i32, i32
  }
  func.func @transform_1(%arg0: i32) -> (i32, i32) {
    %c0_i32 = arith.constant 0 : i32
    %c0_i32_0 = arith.constant 0 : i32
    %c0_i32_1 = arith.constant 0 : i32
    return %c0_i32, %c0_i32_0 : i32, i32
  }
  func.func @transform_2(%arg0: i32) -> (i32, i32, i32) {
    %c0_i32 = arith.constant 0 : i32
    %c0_i32_0 = arith.constant 0 : i32
    %c0_i32_1 = arith.constant 0 : i32
    %c0_i32_2 = arith.constant 0 : i32
    return %c0_i32, %c0_i32_0, %c0_i32_1 : i32, i32, i32
  }
  func.func @transform_3(%arg0: i32) -> (i32, i32) {
    %c0_i32 = arith.constant 0 : i32
    %c0_i32_0 = arith.constant 0 : i32
    %c0_i32_1 = arith.constant 0 : i32
    return %c0_i32, %c0_i32_0 : i32, i32
  }
  func.func @transform_4(%arg0: i32) -> (i32, i32) {
    %c0_i32 = arith.constant 0 : i32
    %c0_i32_0 = arith.constant 0 : i32
    return %arg0, %c0_i32 : i32, i32
  }
}

</mosaic_0001>

<llo_original>
// kernel: tpu_custom_call.1
$region0: #{tpu_custom_call.1}
  #allocation0 [shape = 'u32[]', space=smem, size = 0x4, offset = 0x4, fixed_abs, tag = 'smem constant byte address 0x4 - core index']
  #allocation1 [shape = 'u32[144,128]{1,0:T(1,128)}', space=vmem, size = 0x12000, scoped, tag = 'internal scratch']
  %s0 = inlined_call_operand.hbm [shape: f32[20,32], index: 0, kind: input, shape index: {}]
  %s1 = inlined_call_operand.hbm [shape: bf16[32,128], index: 1, kind: input, shape index: {}]
  %s2 = inlined_call_operand.hbm [shape: bf16[4,128,128], index: 2, kind: input, shape index: {}]
  %s3 = inlined_call_operand.hbm [shape: f32[5,128], index: 3, kind: input, shape index: {}]
  %s4 = inlined_call_operand.hbm [shape: bf16[20,128], index: 4, kind: output, shape index: {}]
  %s5 = sld [smem:[#allocation0]]
  $region42: #{tpu_custom_call.1} parent=0
    _
  %s7 = ssub.s32 1, %s5
  %s8 = scalar_select 0, %s7, %s5
  $region1: #{tpu_custom_call.1} parent=0
    #allocation2 [shape = 'u8[12288]{0}', space=vmem, size = 0x3000, scoped, tag = 'input window, operand 0, single buffered']
    #allocation3 [shape = 's32[1]{0}', space=sflag, size = 0x4, scoped, tag = 'scoped memory for tpu_custom_call.1']
    #allocation4 [shape = 's32[1]{0}', space=sflag, size = 0x4, scoped, tag = 'scoped memory for tpu_custom_call.1']
    #allocation5 [shape = 'u8[8192]{0}', space=vmem, size = 0x2000, scoped, tag = 'input window, operand 1, single buffered']
    #allocation6 [shape = 's32[1]{0}', space=sflag, size = 0x4, scoped, tag = 'scoped memory for tpu_custom_call.1']
    #allocation7 [shape = 'u8[131072]{0}', space=vmem, size = 0x20000, scoped, tag = 'input window, operand 2, single buffered']
    #allocation8 [shape = 'u8[4096]{0}', space=vmem, size = 0x1000, scoped, tag = 'input window, operand 3, single buffered']
    #allocation9 [shape = 's32[1]{0}', space=sflag, size = 0x4, scoped, tag = 'scoped memory for tpu_custom_call.1']
    #allocation10 [shape = 'u8[6144]{0}', space=vmem, size = 0x1800, scoped, tag = 'output window, operand 0, single buffered']
    %9 = vsyncpa [#allocation3], 0
    %10 = vsyncpa [#allocation6], 0
    %11 = vsyncpa [#allocation9], 0
    %12 = vsyncpa [#allocation4], 0
    // Predicated region
    $region2: #{tpu_custom_call.1} parent=1 // pred_check
      _
    $region3: #{tpu_custom_call.1} parent=1 // pred_check_branch
      %14 = sbr.rel (0) target = $region5
    $region4: #{tpu_custom_call.1} parent=1 // pred_region
      %s16 = ssub.s32 384, 384
      %17 = vsyncadd [#allocation3], %s16
      %s18 = sshll.u32 [#allocation2], 4
      %s19 = int_to_ptr.vmem [resolvable:$true] %s18
      %24 = dma.hbm_to_vmem [thread:$0]  %s0, 384, %s19, [#allocation3], 128, 128, 8
    $region5: #{tpu_custom_call.1} parent=1 // pred_fallthru
      _
    // Predicated region
    $region6: #{tpu_custom_call.1} parent=1 // pred_check
      _
    $region7: #{tpu_custom_call.1} parent=1 // pred_check_branch
      %26 = sbr.rel (0) target = $region9
    $region8: #{tpu_custom_call.1} parent=1 // pred_region
      %s28 = ssub.s32 256, 256
      %29 = vsyncadd [#allocation6], %s28
      %s30 = sshll.u32 [#allocation5], 4
      %s31 = int_to_ptr.vmem [resolvable:$true] %s30
      %36 = dma.hbm_to_vmem [thread:$0]  %s1, 256, %s31, [#allocation6], 64, 64, 4
    $region9: #{tpu_custom_call.1} parent=1 // pred_fallthru
      _
    // Predicated region
    $region10: #{tpu_custom_call.1} parent=1 // pred_check
      _
    $region11: #{tpu_custom_call.1} parent=1 // pred_check_branch
      %38 = sbr.rel (0) target = $region13
    $region12: #{tpu_custom_call.1} parent=1 // pred_region
      %s40 = ssub.s32 4096, 4096
      %41 = vsyncadd [#allocation6], %s40
      %s42 = sshll.u32 [#allocation7], 4
      %s43 = int_to_ptr.vmem [resolvable:$true] %s42
      %48 = dma.hbm_to_vmem [thread:$0]  %s2, 4096, %s43, [#allocation6], 64, 64, 4
    $region13: #{tpu_custom_call.1} parent=1 // pred_fallthru
      _
    // Predicated region
    $region14: #{tpu_custom_call.1} parent=1 // pred_check
      _
    $region15: #{tpu_custom_call.1} parent=1 // pred_check_branch
      %50 = sbr.rel (0) target = $region17
    $region16: #{tpu_custom_call.1} parent=1 // pred_region
      %s52 = ssub.s32 128, 128
      %53 = vsyncadd [#allocation9], %s52
      %s55 = sshll.u32 [#allocation8], 4
      %s56 = int_to_ptr.vmem [resolvable:$true] %s55
      %58 = dma.hbm_to_vmem [thread:$0]  %s3, 128, %s56, [#allocation9]
    $region17: #{tpu_custom_call.1} parent=1 // pred_fallthru
      _
    // Predicated region
    $region18: #{tpu_custom_call.1} parent=1 // pred_check
      _
    $region19: #{tpu_custom_call.1} parent=1 // pred_check_branch
      %60 = sbr.rel (0) target = $region21
    $region20: #{tpu_custom_call.1} parent=1 // pred_region
      %61 = dma.done [#allocation3], 384
    $region21: #{tpu_custom_call.1} parent=1 // pred_fallthru
      _
    // Predicated region
    $region22: #{tpu_custom_call.1} parent=1 // pred_check
      _
    $region23: #{tpu_custom_call.1} parent=1 // pred_check_branch
      %63 = sbr.rel (0) target = $region25
    $region24: #{tpu_custom_call.1} parent=1 // pred_region
      %64 = dma.done [#allocation6], 256
    $region25: #{tpu_custom_call.1} parent=1 // pred_fallthru
      _
    // Predicated region
    $region26: #{tpu_custom_call.1} parent=1 // pred_check
      _
    $region27: #{tpu_custom_call.1} parent=1 // pred_check_branch
      %66 = sbr.rel (0) target = $region29
    $region28: #{tpu_custom_call.1} parent=1 // pred_region
      %67 = dma.done [#allocation6], 4096
    $region29: #{tpu_custom_call.1} parent=1 // pred_fallthru
      _
    // Predicated region
    $region30: #{tpu_custom_call.1} parent=1 // pred_check
      _
    $region31: #{tpu_custom_call.1} parent=1 // pred_check_branch
      %69 = sbr.rel (0) target = $region33
    $region32: #{tpu_custom_call.1} parent=1 // pred_region
      %70 = dma.done [#allocation9], 128
    $region33: #{tpu_custom_call.1} parent=1 // pred_fallthru
      _
    %v72 = vld [vmem:[#allocation2] sm:$0xff]
    %v73 = vld [vmem:[#allocation2 + $0x8] sm:$0xff]
    %v74 = vld [vmem:[#allocation2 + $0x10] sm:$0xff]
    %v75 = vpack.c.bf16 %v73, %v72
    %v76 = vpack.c.bf16 %v74, %v74
    %v77 = vld [vmem:[#allocation5] sm:$0xf]
    %v78 = vld [vmem:[#allocation5 + $0x4] sm:$0xf]
    %v79 = vld [vmem:[#allocation5 + $0x8] sm:$0xf]
    %v80 = vld [vmem:[#allocation5 + $0xc] sm:$0xf]
    %v81 = vld [vmem:[#allocation8] sm:$0x1]
    %v82 = vlaneseq
    %v83 = vshrl.u32 %v82, 7
    %v84 = vsub.s32 0, %v83
    %v85 = vrot.slane %v81, %v84
    %v90 = vunpack.c.l.b16 %v77
    %v91 = vunpack.c.l.b16 %v78
    %v92 = vunpack.c.l.b16 %v79
    %v93 = vunpack.c.l.b16 %v80
    %v94 = vpack.c.b16 %v91, %v90
    %v95 = vpack.c.b16 %v93, %v92
    %vm98 = vcmask 261120
    %v100 = vsel %vm98, %v75, 0
    %v103 = vsel %vm98, %v76, 0
    %105 = vmatprep.subr.bf16.mxu0 0
    %106 = vmatpush1.bf16.msra.mxu0 0
    %107 = vmatprep.subr.bf16.mxu0 0
    %108 = vmatpush1.bf16.msra.mxu0 0
    %109 = vmatprep.subr.bf16.mxu0 0
    %110 = vmatpush1.bf16.msra.mxu0 0
    %111 = vmatprep.subr.bf16.mxu0 0
    %112 = vmatpush1.bf16.msra.mxu0 0
    %113 = vmatprep.subr.bf16.mxu0 0
    %114 = vmatpush1.bf16.msra.mxu0 0
    %115 = vmatprep.subr.bf16.mxu0 0
    %116 = vmatpush1.bf16.msra.mxu0 0
    %117 = vmatprep.subr.bf16.mxu0 0
    %118 = vmatpush1.bf16.msra.mxu0 %v95
    %119 = vmatprep.subr.bf16.mxu0 0
    %120 = vmatpush1.bf16.msra.mxu0 %v94
    %121 = vmatprep.subr.bf16.mxu0 0
    %122 = vmatpush2.bf16.msra.mxu0 0
    %123 = vmatprep.subr.bf16.mxu0 0
    %124 = vmatpush2.bf16.msra.mxu0 0
    %125 = vmatprep.subr.bf16.mxu0 0
    %126 = vmatpush2.bf16.msra.mxu0 0
    %127 = vmatprep.subr.bf16.mxu0 0
    %128 = vmatpush2.bf16.msra.mxu0 0
    %129 = vmatprep.subr.bf16.mxu0 0
    %130 = vmatpush2.bf16.msra.mxu0 0
    %131 = vmatprep.subr.bf16.mxu0 0
    %132 = vmatpush2.bf16.msra.mxu0 0
    %133 = vmatprep.subr.bf16.mxu0 0
    %134 = vmatpush2.bf16.msra.mxu0 0
    %135 = vmatprep.subr.bf16.mxu0 0
    %136 = vmatpush2.bf16.msra.mxu0 0
    %137 = vmatprep.mubr.bf16.mxu0 0
    %138 = vmatmul.mubr.bf16.gmra.mxu0 %v100
    %v139 = vpop.f32.mrf.mxu0
    %v140 = vadd.f32 %v85, %v139
    %v141 = vpop.f32.mrf.mxu0
    %v142 = vpop.f32.mrf.mxu0
    %v143 = vadd.f32 %v85, %v142
    %v144 = vpop.f32.mrf.mxu0
    %145 = vmatprep.mubr.bf16.mxu0 0
    %146 = vmatmul.mubr.bf16.gmra.mxu0 %v103
    %v147 = vpop.f32.mrf.mxu0
    %v148 = vadd.f32 %v85, %v147
    %v149 = vpop.f32.mrf.mxu0
    %v150 = vpop.f32.mrf.mxu0
    %v151 = vpop.f32.mrf.mxu0
    %152 = vdwg.mxu0
    %v153 = vmax.f32 %v140, 0.0
    %v154 = vmax.f32 %v143, 0.0
    %v155 = vmax.f32 %v148, 0.0
    %v156 = vpack.c.bf16 %v154, %v153
    %v157 = vpack.c.bf16 %v155, %v155
    %v158 = vld [vmem:[#allocation7] sm:$0xf]
    %v159 = vld [vmem:[#allocation7 + $0x4] sm:$0xf]
    %v160 = vld [vmem:[#allocation7 + $0x8] sm:$0xf]
    %v161 = vld [vmem:[#allocation7 + $0xc] sm:$0xf]
    %v162 = vld [vmem:[#allocation7 + $0x10] sm:$0xf]
    %v163 = vld [vmem:[#allocation7 + $0x14] sm:$0xf]
    %v164 = vld [vmem:[#allocation7 + $0x18] sm:$0xf]
    %v165 = vld [vmem:[#allocation7 + $0x1c] sm:$0xf]
    %v166 = vld [vmem:[#allocation7 + $0x20] sm:$0xf]
    %v167 = vld [vmem:[#allocation7 + $0x24] sm:$0xf]
    %v168 = vld [vmem:[#allocation7 + $0x28] sm:$0xf]
    %v169 = vld [vmem:[#allocation7 + $0x2c] sm:$0xf]
    %v170 = vld [vmem:[#allocation7 + $0x30] sm:$0xf]
    %v171 = vld [vmem:[#allocation7 + $0x34] sm:$0xf]
    %v172 = vld [vmem:[#allocation7 + $0x38] sm:$0xf]
    %v173 = vld [vmem:[#allocation7 + $0x3c] sm:$0xf]
    %v174 = vld [vmem:[#allocation8 + $0x1] sm:$0x1]
    %v175 = vlaneseq
    %v176 = vshrl.u32 %v175, 7
    %v177 = vsub.s32 0, %v176
    %v178 = vrot.slane %v174, %v177
    %v195 = vunpack.c.l.b16 %v158
    %v196 = vunpack.c.l.b16 %v159
    %v197 = vunpack.c.l.b16 %v160
    %v198 = vunpack.c.l.b16 %v161
    %v199 = vunpack.c.l.b16 %v162
    %v200 = vunpack.c.l.b16 %v163
    %v201 = vunpack.c.l.b16 %v164
    %v202 = vunpack.c.l.b16 %v165
    %v203 = vunpack.c.l.b16 %v166
    %v204 = vunpack.c.l.b16 %v167
    %v205 = vunpack.c.l.b16 %v168
    %v206 = vunpack.c.l.b16 %v169
    %v207 = vunpack.c.l.b16 %v170
    %v208 = vunpack.c.l.b16 %v171
    %v209 = vunpack.c.l.b16 %v172
    %v210 = vunpack.c.l.b16 %v173
    %v211 = vpack.c.b16 %v196, %v195
    %v212 = vpack.c.b16 %v198, %v197
    %v213 = vpack.c.b16 %v200, %v199
    %v214 = vpack.c.b16 %v202, %v201
    %v215 = vpack.c.b16 %v204, %v203
    %v216 = vpack.c.b16 %v206, %v205
    %v217 = vpack.c.b16 %v208, %v207
    %v218 = vpack.c.b16 %v210, %v209
    %227 = vmatprep.subr.bf16.mxu0 0
    %228 = vmatpush1.bf16.msra.mxu0 %v218
    %229 = vmatprep.subr.bf16.mxu0 0
    %230 = vmatpush1.bf16.msra.mxu0 %v217
    %231 = vmatprep.subr.bf16.mxu0 0
    %232 = vmatpush1.bf16.msra.mxu0 %v216
    %233 = vmatprep.subr.bf16.mxu0 0
    %234 = vmatpush1.bf16.msra.mxu0 %v215
    %235 = vmatprep.subr.bf16.mxu0 0
    %236 = vmatpush1.bf16.msra.mxu0 %v214
    %237 = vmatprep.subr.bf16.mxu0 0
    %238 = vmatpush1.bf16.msra.mxu0 %v213
    %239 = vmatprep.subr.bf16.mxu0 0
    %240 = vmatpush1.bf16.msra.mxu0 %v212
    %241 = vmatprep.subr.bf16.mxu0 0
    %242 = vmatpush1.bf16.msra.mxu0 %v211
    %243 = vmatprep.subr.bf16.mxu0 0
    %244 = vmatpush2.bf16.msra.mxu0 0
    %245 = vmatprep.subr.bf16.mxu0 0
    %246 = vmatpush2.bf16.msra.mxu0 0
    %247 = vmatprep.subr.bf16.mxu0 0
    %248 = vmatpush2.bf16.msra.mxu0 0
    %249 = vmatprep.subr.bf16.mxu0 0
    %250 = vmatpush2.bf16.msra.mxu0 0
    %251 = vmatprep.subr.bf16.mxu0 0
    %252 = vmatpush2.bf16.msra.mxu0 0
    %253 = vmatprep.subr.bf16.mxu0 0
    %254 = vmatpush2.bf16.msra.mxu0 0
    %255 = vmatprep.subr.bf16.mxu0 0
    %256 = vmatpush2.bf16.msra.mxu0 0
    %257 = vmatprep.subr.bf16.mxu0 0
    %258 = vmatpush2.bf16.msra.mxu0 0
    %259 = vmatprep.mubr.bf16.mxu0 0
    %260 = vmatmul.mubr.bf16.gmra.mxu0 %v156
    %v261 = vpop.f32.mrf.mxu0
    %v262 = vadd.f32 %v178, %v261
    %v263 = vpop.f32.mrf.mxu0
    %v264 = vpop.f32.mrf.mxu0
    %v265 = vadd.f32 %v178, %v264
    %v266 = vpop.f32.mrf.mxu0
    %267 = vmatprep.mubr.bf16.mxu0 0
    %268 = vmatmul.mubr.bf16.gmra.mxu0 %v157
    %v269 = vpop.f32.mrf.mxu0
    %v270 = vadd.f32 %v178, %v269
    %v271 = vpop.f32.mrf.mxu0
    %v272 = vpop.f32.mrf.mxu0
    %v273 = vpop.f32.mrf.mxu0
    %274 = vdwg.mxu0
    %v275 = vmax.f32 %v262, 0.0
    %v276 = vmax.f32 %v265, 0.0
    %v277 = vmax.f32 %v270, 0.0
    %v278 = vpack.c.bf16 %v276, %v275
    %v279 = vpack.c.bf16 %v277, %v277
    %s280 = scalar_lea.vmem [#allocation7], 64
    %v281 = vld [vmem:[%s280] sm:$0xf]
    %v282 = vld [vmem:[%s280 + $0x4] sm:$0xf]
    %v283 = vld [vmem:[%s280 + $0x8] sm:$0xf]
    %v284 = vld [vmem:[%s280 + $0xc] sm:$0xf]
    %v285 = vld [vmem:[%s280 + $0x10] sm:$0xf]
    %v286 = vld [vmem:[%s280 + $0x14] sm:$0xf]
    %v287 = vld [vmem:[%s280 + $0x18] sm:$0xf]
    %v288 = vld [vmem:[%s280 + $0x1c] sm:$0xf]
    %v289 = vld [vmem:[%s280 + $0x20] sm:$0xf]
    %v290 = vld [vmem:[%s280 + $0x24] sm:$0xf]
    %v291 = vld [vmem:[%s280 + $0x28] sm:$0xf]
    %v292 = vld [vmem:[%s280 + $0x2c] sm:$0xf]
    %v293 = vld [vmem:[%s280 + $0x30] sm:$0xf]
    %v294 = vld [vmem:[%s280 + $0x34] sm:$0xf]
    %v295 = vld [vmem:[%s280 + $0x38] sm:$0xf]
    %v296 = vld [vmem:[%s280 + $0x3c] sm:$0xf]
    %v297 = vld [vmem:[#allocation8 + $0x2] sm:$0x1]
    %v298 = vlaneseq
    %v299 = vshrl.u32 %v298, 7
    %v300 = vsub.s32 0, %v299
    %v301 = vrot.slane %v297, %v300
    %v318 = vunpack.c.l.b16 %v281
    %v319 = vunpack.c.l.b16 %v282
    %v320 = vunpack.c.l.b16 %v283
    %v321 = vunpack.c.l.b16 %v284
    %v322 = vunpack.c.l.b16 %v285
    %v323 = vunpack.c.l.b16 %v286
    %v324 = vunpack.c.l.b16 %v287
    %v325 = vunpack.c.l.b16 %v288
    %v326 = vunpack.c.l.b16 %v289
    %v327 = vunpack.c.l.b16 %v290
    %v328 = vunpack.c.l.b16 %v291
    %v329 = vunpack.c.l.b16 %v292
    %v330 = vunpack.c.l.b16 %v293
    %v331 = vunpack.c.l.b16 %v294
    %v332 = vunpack.c.l.b16 %v295
    %v333 = vunpack.c.l.b16 %v296
    %v334 = vpack.c.b16 %v319, %v318
    %v335 = vpack.c.b16 %v321, %v320
    %v336 = vpack.c.b16 %v323, %v322
    %v337 = vpack.c.b16 %v325, %v324
    %v338 = vpack.c.b16 %v327, %v326
    %v339 = vpack.c.b16 %v329, %v328
    %v340 = vpack.c.b16 %v331, %v330
    %v341 = vpack.c.b16 %v333, %v332
    %350 = vmatprep.subr.bf16.mxu0 0
    %351 = vmatpush1.bf16.msra.mxu0 %v341
    %352 = vmatprep.subr.bf16.mxu0 0
    %353 = vmatpush1.bf16.msra.mxu0 %v340
    %354 = vmatprep.subr.bf16.mxu0 0
    %355 = vmatpush1.bf16.msra.mxu0 %v339
    %356 = vmatprep.subr.bf16.mxu0 0
    %357 = vmatpush1.bf16.msra.mxu0 %v338
    %358 = vmatprep.subr.bf16.mxu0 0
    %359 = vmatpush1.bf16.msra.mxu0 %v337
    %360 = vmatprep.subr.bf16.mxu0 0
    %361 = vmatpush1.bf16.msra.mxu0 %v336
    %362 = vmatprep.subr.bf16.mxu0 0
    %363 = vmatpush1.bf16.msra.mxu0 %v335
    %364 = vmatprep.subr.bf16.mxu0 0
    %365 = vmatpush1.bf16.msra.mxu0 %v334
    %366 = vmatprep.subr.bf16.mxu0 0
    %367 = vmatpush2.bf16.msra.mxu0 0
    %368 = vmatprep.subr.bf16.mxu0 0
    %369 = vmatpush2.bf16.msra.mxu0 0
    %370 = vmatprep.subr.bf16.mxu0 0
    %371 = vmatpush2.bf16.msra.mxu0 0
    %372 = vmatprep.subr.bf16.mxu0 0
    %373 = vmatpush2.bf16.msra.mxu0 0
    %374 = vmatprep.subr.bf16.mxu0 0
    %375 = vmatpush2.bf16.msra.mxu0 0
    %376 = vmatprep.subr.bf16.mxu0 0
    %377 = vmatpush2.bf16.msra.mxu0 0
    %378 = vmatprep.subr.bf16.mxu0 0
    %379 = vmatpush2.bf16.msra.mxu0 0
    %380 = vmatprep.subr.bf16.mxu0 0
    %381 = vmatpush2.bf16.msra.mxu0 0
    %382 = vmatprep.mubr.bf16.mxu0 0
    %383 = vmatmul.mubr.bf16.gmra.mxu0 %v278
    %v384 = vpop.f32.mrf.mxu0
    %v385 = vadd.f32 %v301, %v384
    %v386 = vpop.f32.mrf.mxu0
    %v387 = vpop.f32.mrf.mxu0
    %v388 = vadd.f32 %v301, %v387
    %v389 = vpop.f32.mrf.mxu0
    %390 = vmatprep.mubr.bf16.mxu0 0
    %391 = vmatmul.mubr.bf16.gmra.mxu0 %v279
    %v392 = vpop.f32.mrf.mxu0
    %v393 = vadd.f32 %v301, %v392
    %v394 = vpop.f32.mrf.mxu0
    %v395 = vpop.f32.mrf.mxu0
    %v396 = vpop.f32.mrf.mxu0
    %397 = vdwg.mxu0
    %v398 = vmax.f32 %v385, 0.0
    %v399 = vmax.f32 %v388, 0.0
    %v400 = vmax.f32 %v393, 0.0
    %v401 = vpack.c.bf16 %v399, %v398
    %v402 = vpack.c.bf16 %v400, %v400
    %s403 = scalar_lea.vmem [#allocation7], 128
    %v404 = vld [vmem:[%s403] sm:$0xf]
    %v405 = vld [vmem:[%s403 + $0x4] sm:$0xf]
    %v406 = vld [vmem:[%s403 + $0x8] sm:$0xf]
    %v407 = vld [vmem:[%s403 + $0xc] sm:$0xf]
    %v408 = vld [vmem:[%s403 + $0x10] sm:$0xf]
    %v409 = vld [vmem:[%s403 + $0x14] sm:$0xf]
    %v410 = vld [vmem:[%s403 + $0x18] sm:$0xf]
    %v411 = vld [vmem:[%s403 + $0x1c] sm:$0xf]
    %v412 = vld [vmem:[%s403 + $0x20] sm:$0xf]
    %v413 = vld [vmem:[%s403 + $0x24] sm:$0xf]
    %v414 = vld [vmem:[%s403 + $0x28] sm:$0xf]
    %v415 = vld [vmem:[%s403 + $0x2c] sm:$0xf]
    %v416 = vld [vmem:[%s403 + $0x30] sm:$0xf]
    %v417 = vld [vmem:[%s403 + $0x34] sm:$0xf]
    %v418 = vld [vmem:[%s403 + $0x38] sm:$0xf]
    %v419 = vld [vmem:[%s403 + $0x3c] sm:$0xf]
    %v420 = vld [vmem:[#allocation8 + $0x3] sm:$0x1]
    %v421 = vlaneseq
    %v422 = vshrl.u32 %v421, 7
    %v423 = vsub.s32 0, %v422
    %v424 = vrot.slane %v420, %v423
    %v441 = vunpack.c.l.b16 %v404
    %v442 = vunpack.c.l.b16 %v405
    %v443 = vunpack.c.l.b16 %v406
    %v444 = vunpack.c.l.b16 %v407
    %v445 = vunpack.c.l.b16 %v408
    %v446 = vunpack.c.l.b16 %v409
    %v447 = vunpack.c.l.b16 %v410
    %v448 = vunpack.c.l.b16 %v411
    %v449 = vunpack.c.l.b16 %v412
    %v450 = vunpack.c.l.b16 %v413
    %v451 = vunpack.c.l.b16 %v414
    %v452 = vunpack.c.l.b16 %v415
    %v453 = vunpack.c.l.b16 %v416
    %v454 = vunpack.c.l.b16 %v417
    %v455 = vunpack.c.l.b16 %v418
    %v456 = vunpack.c.l.b16 %v419
    %v457 = vpack.c.b16 %v442, %v441
    %v458 = vpack.c.b16 %v444, %v443
    %v459 = vpack.c.b16 %v446, %v445
    %v460 = vpack.c.b16 %v448, %v447
    %v461 = vpack.c.b16 %v450, %v449
    %v462 = vpack.c.b16 %v452, %v451
    %v463 = vpack.c.b16 %v454, %v453
    %v464 = vpack.c.b16 %v456, %v455
    %473 = vmatprep.subr.bf16.mxu0 0
    %474 = vmatpush1.bf16.msra.mxu0 %v464
    %475 = vmatprep.subr.bf16.mxu0 0
    %476 = vmatpush1.bf16.msra.mxu0 %v463
    %477 = vmatprep.subr.bf16.mxu0 0
    %478 = vmatpush1.bf16.msra.mxu0 %v462
    %479 = vmatprep.subr.bf16.mxu0 0
    %480 = vmatpush1.bf16.msra.mxu0 %v461
    %481 = vmatprep.subr.bf16.mxu0 0
    %482 = vmatpush1.bf16.msra.mxu0 %v460
    %483 = vmatprep.subr.bf16.mxu0 0
    %484 = vmatpush1.bf16.msra.mxu0 %v459
    %485 = vmatprep.subr.bf16.mxu0 0
    %486 = vmatpush1.bf16.msra.mxu0 %v458
    %487 = vmatprep.subr.bf16.mxu0 0
    %488 = vmatpush1.bf16.msra.mxu0 %v457
    %489 = vmatprep.subr.bf16.mxu0 0
    %490 = vmatpush2.bf16.msra.mxu0 0
    %491 = vmatprep.subr.bf16.mxu0 0
    %492 = vmatpush2.bf16.msra.mxu0 0
    %493 = vmatprep.subr.bf16.mxu0 0
    %494 = vmatpush2.bf16.msra.mxu0 0
    %495 = vmatprep.subr.bf16.mxu0 0
    %496 = vmatpush2.bf16.msra.mxu0 0
    %497 = vmatprep.subr.bf16.mxu0 0
    %498 = vmatpush2.bf16.msra.mxu0 0
    %499 = vmatprep.subr.bf16.mxu0 0
    %500 = vmatpush2.bf16.msra.mxu0 0
    %501 = vmatprep.subr.bf16.mxu0 0
    %502 = vmatpush2.bf16.msra.mxu0 0
    %503 = vmatprep.subr.bf16.mxu0 0
    %504 = vmatpush2.bf16.msra.mxu0 0
    %505 = vmatprep.mubr.bf16.mxu0 0
    %506 = vmatmul.mubr.bf16.gmra.mxu0 %v401
    %v507 = vpop.f32.mrf.mxu0
    %v508 = vadd.f32 %v424, %v507
    %v509 = vpop.f32.mrf.mxu0
    %v510 = vpop.f32.mrf.mxu0
    %v511 = vadd.f32 %v424, %v510
    %v512 = vpop.f32.mrf.mxu0
    %513 = vmatprep.mubr.bf16.mxu0 0
    %514 = vmatmul.mubr.bf16.gmra.mxu0 %v402
    %v515 = vpop.f32.mrf.mxu0
    %v516 = vadd.f32 %v424, %v515
    %v517 = vpop.f32.mrf.mxu0
    %v518 = vpop.f32.mrf.mxu0
    %v519 = vpop.f32.mrf.mxu0
    %520 = vdwg.mxu0
    %v521 = vmax.f32 %v508, 0.0
    %v522 = vmax.f32 %v511, 0.0
    %v523 = vmax.f32 %v516, 0.0
    %v524 = vpack.c.bf16 %v522, %v521
    %v525 = vpack.c.bf16 %v523, %v523
    %s526 = scalar_lea.vmem [#allocation7], 192
    %v527 = vld [vmem:[%s526] sm:$0xf]
    %v528 = vld [vmem:[%s526 + $0x4] sm:$0xf]
    %v529 = vld [vmem:[%s526 + $0x8] sm:$0xf]
    %v530 = vld [vmem:[%s526 + $0xc] sm:$0xf]
    %v531 = vld [vmem:[%s526 + $0x10] sm:$0xf]
    %v532 = vld [vmem:[%s526 + $0x14] sm:$0xf]
    %v533 = vld [vmem:[%s526 + $0x18] sm:$0xf]
    %v534 = vld [vmem:[%s526 + $0x1c] sm:$0xf]
    %v535 = vld [vmem:[%s526 + $0x20] sm:$0xf]
    %v536 = vld [vmem:[%s526 + $0x24] sm:$0xf]
    %v537 = vld [vmem:[%s526 + $0x28] sm:$0xf]
    %v538 = vld [vmem:[%s526 + $0x2c] sm:$0xf]
    %v539 = vld [vmem:[%s526 + $0x30] sm:$0xf]
    %v540 = vld [vmem:[%s526 + $0x34] sm:$0xf]
    %v541 = vld [vmem:[%s526 + $0x38] sm:$0xf]
    %v542 = vld [vmem:[%s526 + $0x3c] sm:$0xf]
    %v543 = vld [vmem:[#allocation8 + $0x4] sm:$0x1]
    %v544 = vlaneseq
    %v545 = vshrl.u32 %v544, 7
    %v546 = vsub.s32 0, %v545
    %v547 = vrot.slane %v543, %v546
    %v564 = vunpack.c.l.b16 %v527
    %v565 = vunpack.c.l.b16 %v528
    %v566 = vunpack.c.l.b16 %v529
    %v567 = vunpack.c.l.b16 %v530
    %v568 = vunpack.c.l.b16 %v531
    %v569 = vunpack.c.l.b16 %v532
    %v570 = vunpack.c.l.b16 %v533
    %v571 = vunpack.c.l.b16 %v534
    %v572 = vunpack.c.l.b16 %v535
    %v573 = vunpack.c.l.b16 %v536
    %v574 = vunpack.c.l.b16 %v537
    %v575 = vunpack.c.l.b16 %v538
    %v576 = vunpack.c.l.b16 %v539
    %v577 = vunpack.c.l.b16 %v540
    %v578 = vunpack.c.l.b16 %v541
    %v579 = vunpack.c.l.b16 %v542
    %v580 = vpack.c.b16 %v565, %v564
    %v581 = vpack.c.b16 %v567, %v566
    %v582 = vpack.c.b16 %v569, %v568
    %v583 = vpack.c.b16 %v571, %v570
    %v584 = vpack.c.b16 %v573, %v572
    %v585 = vpack.c.b16 %v575, %v574
    %v586 = vpack.c.b16 %v577, %v576
    %v587 = vpack.c.b16 %v579, %v578
    %596 = vmatprep.subr.bf16.mxu0 0
    %597 = vmatpush1.bf16.msra.mxu0 %v587
    %598 = vmatprep.subr.bf16.mxu0 0
    %599 = vmatpush1.bf16.msra.mxu0 %v586
    %600 = vmatprep.subr.bf16.mxu0 0
    %601 = vmatpush1.bf16.msra.mxu0 %v585
    %602 = vmatprep.subr.bf16.mxu0 0
    %603 = vmatpush1.bf16.msra.mxu0 %v584
    %604 = vmatprep.subr.bf16.mxu0 0
    %605 = vmatpush1.bf16.msra.mxu0 %v583
    %606 = vmatprep.subr.bf16.mxu0 0
    %607 = vmatpush1.bf16.msra.mxu0 %v582
    %608 = vmatprep.subr.bf16.mxu0 0
    %609 = vmatpush1.bf16.msra.mxu0 %v581
    %610 = vmatprep.subr.bf16.mxu0 0
    %611 = vmatpush1.bf16.msra.mxu0 %v580
    %612 = vmatprep.subr.bf16.mxu0 0
    %613 = vmatpush2.bf16.msra.mxu0 0
    %614 = vmatprep.subr.bf16.mxu0 0
    %615 = vmatpush2.bf16.msra.mxu0 0
    %616 = vmatprep.subr.bf16.mxu0 0
    %617 = vmatpush2.bf16.msra.mxu0 0
    %618 = vmatprep.subr.bf16.mxu0 0
    %619 = vmatpush2.bf16.msra.mxu0 0
    %620 = vmatprep.subr.bf16.mxu0 0
    %621 = vmatpush2.bf16.msra.mxu0 0
    %622 = vmatprep.subr.bf16.mxu0 0
    %623 = vmatpush2.bf16.msra.mxu0 0
    %624 = vmatprep.subr.bf16.mxu0 0
    %625 = vmatpush2.bf16.msra.mxu0 0
    %626 = vmatprep.subr.bf16.mxu0 0
    %627 = vmatpush2.bf16.msra.mxu0 0
    %628 = vmatprep.mubr.bf16.mxu0 0
    %629 = vmatmul.mubr.bf16.gmra.mxu0 %v524
    %v630 = vpop.f32.mrf.mxu0
    %v631 = vadd.f32 %v547, %v630
    %v632 = vpop.f32.mrf.mxu0
    %v633 = vpop.f32.mrf.mxu0
    %v634 = vadd.f32 %v547, %v633
    %v635 = vpop.f32.mrf.mxu0
    %636 = vmatprep.mubr.bf16.mxu0 0
    %637 = vmatmul.mubr.bf16.gmra.mxu0 %v525
    %v638 = vpop.f32.mrf.mxu0
    %v639 = vadd.f32 %v547, %v638
    %v640 = vpop.f32.mrf.mxu0
    %v641 = vpop.f32.mrf.mxu0
    %v642 = vpop.f32.mrf.mxu0
    %643 = vdwg.mxu0
    %v644 = vmax.f32 %v631, 0.0
    %v645 = vmax.f32 %v634, 0.0
    %v646 = vmax.f32 %v639, 0.0
    %v647 = vpack.c.bf16 %v645, %v644
    %v648 = vpack.c.bf16 %v646, %v646
    %v651 = vunpack.c.l.b16 %v647
    %v652 = vunpack.c.h.b16 %v647
    %v653 = vunpack.c.l.b16 %v648
    %v654 = vpack.c.b16 %v651, %v651
    %v655 = vpack.c.b16 %v652, %v652
    %v656 = vpack.c.b16 %v653, %v653
    %660 = vst [vmem:[#allocation10] sm:$0xf] %v654
    %661 = vst [vmem:[#allocation10 + $0x4] sm:$0xf] %v655
    %662 = vst [vmem:[#allocation10 + $0x8] sm:$0xf] %v656
    // Predicated region
    $region34: #{tpu_custom_call.1} parent=1 // pred_check
      _
    $region35: #{tpu_custom_call.1} parent=1 // pred_check_branch
      %664 = sbr.rel (0) target = $region37
    $region36: #{tpu_custom_call.1} parent=1 // pred_region
      %s666 = ssub.s32 192, 192
      %667 = vsyncadd [#allocation4], %s666
      %s668 = sshll.u32 [#allocation10], 4
      %s669 = int_to_ptr.vmem [resolvable:$true] %s668
      %674 = dma.vmem_to_hbm [thread:$0]  %s669, 192, %s4, [#allocation4], 64, 64, 4
    $region37: #{tpu_custom_call.1} parent=1 // pred_fallthru
      _
    // Predicated region
    $region38: #{tpu_custom_call.1} parent=1 // pred_check
      _
    $region39: #{tpu_custom_call.1} parent=1 // pred_check_branch
      %676 = sbr.rel (0) target = $region41
    $region40: #{tpu_custom_call.1} parent=1 // pred_region
      %677 = dma.done [#allocation4], 192
    $region41: #{tpu_custom_call.1} parent=1 // pred_fallthru
      _
    %678 = vsyncpa [#allocation3], 1
    %679 = vsyncpa [#allocation6], 1
    %680 = vsyncpa [#allocation9], 1
    %681 = vsyncpa [#allocation4], 1

</llo_original>
